<compile_context>
chip_gen: v7x
topology: tpu7x:2x2x1
jax: 0.10.0
libtpu: 0.0.40
codegen_flags: <defaults>
</compile_context>

<pallas_src>
import functools

import jax
import jax.numpy as jnp
from jax.experimental import pallas as pl
from jax.experimental.pallas import tpu as pltpu


def _round_up(n, m):
    return ((n + m - 1) // m) * m


def _next_pow2(n):
    p = 1
    while p < n:
        p *= 2
    return p


def _corr2d_kernel(x_ref, k_ref, b_ref, o_ref, *, kh, kw):
    """One packed slab per grid step.

    x_ref : (R, L) f32 in VMEM   (L % 128 == 0, R % 8 == 0; many images packed
                                  along both sublanes and lanes)
    k_ref : (kh*kw,) f32 in SMEM (flattened filter taps)
    b_ref : (1,)     f32 in SMEM (scalar bias)
    o_ref : (R, L) f32 in VMEM   (valid data extracted by the wrapper)
    """
    x = x_ref[...]
    R, L = x.shape
    bias = b_ref[0]

    # Hoist lane rolls: kw lane-shifted copies of the slab (cheap; matters
    # when L > 128, neutral for a single 128-lane group).
    # roll(x, L - dj, axis=1)[i, j] == x[i, (j + dj) % L]
    x_cols = [x if dj == 0 else pltpu.roll(x, L - dj, axis=1)
              for dj in range(kw)]

    # Two independent accumulator chains so the serial mul->add dependence
    # does not bound the VPU; summed once at the end.
    accs = [None, None]
    t = 0
    for di in range(kh):
        for dj in range(kw):
            xs = (x_cols[dj] if di == 0
                  else pltpu.roll(x_cols[dj], R - di, axis=0))
            term = k_ref[di * kw + dj] * xs
            slot = t & 1
            if accs[slot] is None:
                # Fuse the bias into the very first tap (no separate
                # full-tile broadcast + add).
                accs[slot] = term + bias if t == 0 else term
            else:
                accs[slot] = accs[slot] + term
            t += 1

    out = accs[0] if accs[1] is None else accs[0] + accs[1]
    o_ref[...] = out


# Cap on rows per grid block: keeps each (R, L) f32 block ~1 MiB, well inside
# the default scoped VMEM on every generation (incl. v7x's 64 MiB physical).
_MAX_ROWS_PER_BLOCK = 2048


@jax.jit
def conv2d_pallas_batched(x, weight, bias):
    """Apply the module's corr2d + bias to a batch of images.

    x: (B, H, W), weight: (kh, kw), bias: (1,)
    returns: (B, H - kh + 1, W - kw + 1) f32
    """
    B, H, W = x.shape
    kh, kw = weight.shape
    Ho, Wo = H - kh + 1, W - kw + 1
    assert Ho > 0 and Wo > 0

    # ---- Lane packing geometry -------------------------------------------
    if W <= 128:
        W_img = _next_pow2(max(W, 1))   # power of two >= W, divides 128
        p = 128 // W_img                # images side by side per lane group
        L = 128
    else:
        W_img = _round_up(W, 128)
        p = 1
        L = W_img

    G = -(-B // p)                      # number of lane groups

    # ---- Grid / block geometry -------------------------------------------
    # >= 2 blocks whenever possible (v7x has 2 TCs; a no-op on v5e/v6e),
    # bounded block rows so a block stays comfortably in VMEM.
    if G <= 1:
        n_blocks = 1
    else:
        n_blocks = min(G, max(2, -(-(G * H) // _MAX_ROWS_PER_BLOCK)))
    gpb = -(-G // n_blocks)             # lane groups per block
    n_blocks = -(-G // gpb)
    G_pad = n_blocks * gpb
    B_pad = G_pad * p
    R_data = gpb * H                    # real rows per block
    R = _round_up(R_data, 8)            # sublane-aligned rows per block

    # ---- Pack: (B, H, W) -> (n_blocks, R, L) ------------------------------
    # (zero images for batch padding; zero rows for sublane alignment; all of
    # it is jit-fused with the transpose and discarded on unpack)
    xf = x.astype(jnp.float32)
    xp = jnp.pad(xf, ((0, B_pad - B), (0, 0), (0, W_img - W)))
    xp = xp.reshape(n_blocks, gpb, p, H, W_img)
    xp = xp.transpose(0, 1, 3, 2, 4)            # (n_blocks, gpb, H, p, W_img)
    xp = xp.reshape(n_blocks, R_data, L)
    xp = jnp.pad(xp, ((0, 0), (0, R - R_data), (0, 0)))

    kernel = functools.partial(_corr2d_kernel, kh=kh, kw=kw)
    out = pl.pallas_call(
        kernel,
        out_shape=jax.ShapeDtypeStruct((n_blocks, R, L), jnp.float32),
        grid=(n_blocks,),
        in_specs=[
            # One packed slab per grid step, resident in VMEM.
            pl.BlockSpec((None, R, L), lambda b: (b, 0, 0)),
            # Flattened filter taps + bias are scalars -> SMEM.
            pl.BlockSpec(memory_space=pltpu.MemorySpace.SMEM),
            pl.BlockSpec(memory_space=pltpu.MemorySpace.SMEM),
        ],
        out_specs=pl.BlockSpec((None, R, L), lambda b: (b, 0, 0)),
        compiler_params=pltpu.CompilerParams(
            dimension_semantics=("parallel",)
        ),
    )(xp, weight.reshape(-1).astype(jnp.float32), bias.astype(jnp.float32))

    # ---- Unpack: (n_blocks, R, L) -> (B, Ho, Wo) ---------------------------
    out = out[:, :R_data, :].reshape(n_blocks, gpb, H, p, W_img)
    out = out.transpose(0, 1, 3, 2, 4).reshape(B_pad, H, W_img)
    return out[:B, :Ho, :Wo]


def conv2d_pallas(x, weight, bias):
    """Exact forward() semantics of the PyTorch module: (H, W) -> (Ho, Wo)."""
    return conv2d_pallas_batched(x[None], weight, bias)[0]


def conv2d_reference(x, weight, bias):
    """Pure-JAX reference matching the PyTorch corr2d loop semantics."""
    kh, kw = weight.shape
    Ho = x.shape[-2] - kh + 1
    Wo = x.shape[-1] - kw + 1
    acc = jnp.zeros(x.shape[:-2] + (Ho, Wo), jnp.float32) + bias[0]
    for di in range(kh):
        for dj in range(kw):
            acc = acc + weight[di, dj] * x[..., di:di + Ho, dj:dj + Wo]
    return acc


if __name__ == "__main__":
    key = jax.random.PRNGKey(0)
    kx, kw_key, kb_key, kx2 = jax.random.split(key, 4)

    # Parameters mirroring the module (weight ~ U[0,1)); use a nonzero bias
    # so the bias path is actually exercised numerically.
    weight = jax.random.uniform(kw_key, (3, 3), dtype=jnp.float32)
    bias = jax.random.normal(kb_key, (1,), dtype=jnp.float32)

    # Config 1: small square images, batch lane-packs exactly into one group.
    B, H, W = 8, 16, 16
    xb = jax.random.normal(kx, (B, H, W), dtype=jnp.float32)
    out_b = jax.block_until_ready(conv2d_pallas_batched(xb, weight, bias))
    ref_b = conv2d_reference(xb, weight, bias)
    assert out_b.shape == (B, H - 2, W - 2)
    assert jnp.allclose(out_b, ref_b, atol=1e-5, rtol=1e-5)

    # Single-image path: the module's forward() semantics.
    out_1 = jax.block_until_ready(conv2d_pallas(xb[0], weight, bias))
    assert out_1.shape == (H - 2, W - 2)
    assert jnp.allclose(out_1, ref_b[0], atol=1e-5, rtol=1e-5)

    # Config 2: non-power-of-two width, non-square filter, batch that does not
    # divide the lane-pack factor (exercises zero-image padding, sublane
    # alignment padding and a 2-block parallel grid).
    w2 = jax.random.uniform(kw_key, (2, 4), dtype=jnp.float32)
    x2 = jax.random.normal(kx2, (9, 10, 20), dtype=jnp.float32)
    out_2 = jax.block_until_ready(conv2d_pallas_batched(x2, w2, bias))
    ref_2 = conv2d_reference(x2, w2, bias)
    assert out_2.shape == (9, 9, 17)
    assert jnp.allclose(out_2, ref_2, atol=1e-5, rtol=1e-5)

    print("KERNEL_OK")
</pallas_src>

<mosaic_0001>
module attributes {stable_mosaic.version = 11 : i64} {
  func.func @_corr2d_kernel(%arg0: i32, %arg1: memref<1x16x128xf32, #tpu.memory_space<vmem>>, %arg2: memref<9xf32, #tpu.memory_space<smem>>, %arg3: memref<1xf32, #tpu.memory_space<smem>>, %arg4: memref<1x16x128xf32, #tpu.memory_space<vmem>>) attributes {dimension_semantics = [#tpu.dimension_semantics<parallel>], iteration_bounds = array<i64: 1>, scalar_prefetch = 0 : i64, scratch_operands = 0 : i64, tpu.core_type = #tpu.core_type<tc>, window_params = [{transform_indices = @transform_0, window_bounds = array<i64: 1, 16, 128>}, {transform_indices = @transform_1, window_bounds = array<i64: 9>}, {transform_indices = @transform_2, window_bounds = array<i64: 1>}, {transform_indices = @transform_3, window_bounds = array<i64: 1, 16, 128>}]} {
    %c0 = arith.constant 0 : index
    %c0_0 = arith.constant 0 : index
    %c0_1 = arith.constant 0 : index
    %0 = vector.load %arg1[%c0, %c0_0, %c0_1] : memref<1x16x128xf32, #tpu.memory_space<vmem>>, vector<1x16x128xf32>
    %1 = vector.shape_cast %0 : vector<1x16x128xf32> to vector<16x128xf32>
    %c0_2 = arith.constant 0 : index
    %2 = memref.load %arg3[%c0_2] : memref<1xf32, #tpu.memory_space<smem>>
    %c127_i32 = arith.constant 127 : i32
    %3 = tpu.dynamic_rotate %1 by %c127_i32 dim 1 : vector<16x128xf32>, i32 -> vector<16x128xf32>
    %c126_i32 = arith.constant 126 : i32
    %4 = tpu.dynamic_rotate %1 by %c126_i32 dim 1 : vector<16x128xf32>, i32 -> vector<16x128xf32>
    %c0_3 = arith.constant 0 : index
    %5 = memref.load %arg2[%c0_3] : memref<9xf32, #tpu.memory_space<smem>>
    %6 = vector.broadcast %5 : f32 to vector<16x128xf32>
    %7 = arith.mulf %6, %1 : vector<16x128xf32>
    %8 = vector.broadcast %2 : f32 to vector<16x128xf32>
    %9 = arith.addf %7, %8 : vector<16x128xf32>
    %c1 = arith.constant 1 : index
    %10 = memref.load %arg2[%c1] : memref<9xf32, #tpu.memory_space<smem>>
    %11 = vector.broadcast %10 : f32 to vector<16x128xf32>
    %12 = arith.mulf %11, %3 : vector<16x128xf32>
    %c2 = arith.constant 2 : index
    %13 = memref.load %arg2[%c2] : memref<9xf32, #tpu.memory_space<smem>>
    %14 = vector.broadcast %13 : f32 to vector<16x128xf32>
    %15 = arith.mulf %14, %4 : vector<16x128xf32>
    %16 = arith.addf %9, %15 : vector<16x128xf32>
    %c15_i32 = arith.constant 15 : i32
    %17 = tpu.dynamic_rotate %1 by %c15_i32 dim 0 : vector<16x128xf32>, i32 -> vector<16x128xf32>
    %c3 = arith.constant 3 : index
    %18 = memref.load %arg2[%c3] : memref<9xf32, #tpu.memory_space<smem>>
    %19 = vector.broadcast %18 : f32 to vector<16x128xf32>
    %20 = arith.mulf %19, %17 : vector<16x128xf32>
    %21 = arith.addf %12, %20 : vector<16x128xf32>
    %c15_i32_4 = arith.constant 15 : i32
    %22 = tpu.dynamic_rotate %3 by %c15_i32_4 dim 0 : vector<16x128xf32>, i32 -> vector<16x128xf32>
    %c4 = arith.constant 4 : index
    %23 = memref.load %arg2[%c4] : memref<9xf32, #tpu.memory_space<smem>>
    %24 = vector.broadcast %23 : f32 to vector<16x128xf32>
    %25 = arith.mulf %24, %22 : vector<16x128xf32>
    %26 = arith.addf %16, %25 : vector<16x128xf32>
    %c15_i32_5 = arith.constant 15 : i32
    %27 = tpu.dynamic_rotate %4 by %c15_i32_5 dim 0 : vector<16x128xf32>, i32 -> vector<16x128xf32>
    %c5 = arith.constant 5 : index
    %28 = memref.load %arg2[%c5] : memref<9xf32, #tpu.memory_space<smem>>
    %29 = vector.broadcast %28 : f32 to vector<16x128xf32>
    %30 = arith.mulf %29, %27 : vector<16x128xf32>
    %31 = arith.addf %21, %30 : vector<16x128xf32>
    %c14_i32 = arith.constant 14 : i32
    %32 = tpu.dynamic_rotate %1 by %c14_i32 dim 0 : vector<16x128xf32>, i32 -> vector<16x128xf32>
    %c6 = arith.constant 6 : index
    %33 = memref.load %arg2[%c6] : memref<9xf32, #tpu.memory_space<smem>>
    %34 = vector.broadcast %33 : f32 to vector<16x128xf32>
    %35 = arith.mulf %34, %32 : vector<16x128xf32>
    %36 = arith.addf %26, %35 : vector<16x128xf32>
    %c14_i32_6 = arith.constant 14 : i32
    %37 = tpu.dynamic_rotate %3 by %c14_i32_6 dim 0 : vector<16x128xf32>, i32 -> vector<16x128xf32>
    %c7 = arith.constant 7 : index
    %38 = memref.load %arg2[%c7] : memref<9xf32, #tpu.memory_space<smem>>
    %39 = vector.broadcast %38 : f32 to vector<16x128xf32>
    %40 = arith.mulf %39, %37 : vector<16x128xf32>
    %41 = arith.addf %31, %40 : vector<16x128xf32>
    %c14_i32_7 = arith.constant 14 : i32
    %42 = tpu.dynamic_rotate %4 by %c14_i32_7 dim 0 : vector<16x128xf32>, i32 -> vector<16x128xf32>
    %c8 = arith.constant 8 : index
    %43 = memref.load %arg2[%c8] : memref<9xf32, #tpu.memory_space<smem>>
    %44 = vector.broadcast %43 : f32 to vector<16x128xf32>
    %45 = arith.mulf %44, %42 : vector<16x128xf32>
    %46 = arith.addf %36, %45 : vector<16x128xf32>
    %47 = arith.addf %46, %41 : vector<16x128xf32>
    %c0_8 = arith.constant 0 : index
    %c0_9 = arith.constant 0 : index
    %c0_10 = arith.constant 0 : index
    %48 = vector.load %arg4[%c0_8, %c0_9, %c0_10] : memref<1x16x128xf32, #tpu.memory_space<vmem>>, vector<1x16x128xf32>
    %49 = vector.shape_cast %48 : vector<1x16x128xf32> to vector<16x128xf32>
    %50 = vector.shape_cast %47 : vector<16x128xf32> to vector<1x16x128xf32>
    tpu.vector_store %arg4[%c0_8, %c0_9, %c0_10], %50 {strides = array<i32>} : memref<1x16x128xf32, #tpu.memory_space<vmem>>, vector<1x16x128xf32>,
    return
  }
  func.func @transform_0(%arg0: i32) -> (i32, i32, i32) {
    %c0_i32 = arith.constant 0 : i32
    %c0_i32_0 = arith.constant 0 : i32
    %c0_i32_1 = arith.constant 0 : i32
    return %arg0, %c0_i32, %c0_i32_0 : i32, i32, i32
  }
  func.func @transform_1(%arg0: i32) -> i32 {
    %c0_i32 = arith.constant 0 : i32
    %c0_i32_0 = arith.constant 0 : i32
    return %c0_i32 : i32
  }
  func.func @transform_2(%arg0: i32) -> i32 {
    %c0_i32 = arith.constant 0 : i32
    %c0_i32_0 = arith.constant 0 : i32
    return %c0_i32 : i32
  }
  func.func @transform_3(%arg0: i32) -> (i32, i32, i32) {
    %c0_i32 = arith.constant 0 : i32
    %c0_i32_0 = arith.constant 0 : i32
    %c0_i32_1 = arith.constant 0 : i32
    return %arg0, %c0_i32, %c0_i32_0 : i32, i32, i32
  }
}

</mosaic_0001>

<llo_original>
// kernel: conv2d_pallas_batched.1
$region0: #{conv2d_pallas_batched.1}
  #allocation0 [shape = 'u32[]', space=smem, size = 0x4, offset = 0x4, fixed_abs, tag = 'smem constant byte address 0x4 - core index']
  #allocation1 [shape = 'u32[144,128]{1,0:T(1,128)}', space=vmem, size = 0x12000, scoped, tag = 'internal scratch']
  #allocation2 [shape = 'f32[1]{0:T(128)S(6)}', space=smem, size = 0x200, scoped, tag = 'scoped memory for conv2d_pallas_batched.1']
  %s0 = inlined_call_operand.vmem [shape: f32[1,16,128], index: 0, kind: input, shape index: {}]
  %s1 = inlined_call_operand.vmem [shape: f32[9], index: 1, kind: input, shape index: {}]
  %s2 = inlined_call_operand.<no memory space> [shape: f32[1], index: 2, kind: input, shape index: {}]
  %s3 = inlined_call_operand.vmem [shape: f32[1,16,128], index: 3, kind: output, shape index: {}]
  %s4 = sld [smem:[#allocation0]]
  $region26: #{conv2d_pallas_batched.1} parent=0
    _
  %s6 = ssub.s32 1, %s4
  %s7 = scalar_select 0, %s6, %s4
  %8 = sst [smem:[#allocation2]] %s2
  $region1: #{conv2d_pallas_batched.1} parent=0
    #allocation3 [shape = 'u8[512]{0}', space=smem, size = 0x200, scoped, tag = 'input window, operand 1, single buffered']
    #allocation4 [shape = 's32[1]{0}', space=sflag, size = 0x4, scoped, tag = 'scoped memory for conv2d_pallas_batched.1']
    %9 = vsyncpa [#allocation4], 0
    // Predicated region
    $region2: #{conv2d_pallas_batched.1} parent=1 // pred_check
      _
    $region3: #{conv2d_pallas_batched.1} parent=1 // pred_check_branch
      %11 = sbr.rel (0) target = $region5
    $region4: #{conv2d_pallas_batched.1} parent=1 // pred_region
      _
    $region5: #{conv2d_pallas_batched.1} parent=1 // pred_fallthru
      _
    // Predicated region
    $region6: #{conv2d_pallas_batched.1} parent=1 // pred_check
      _
    $region7: #{conv2d_pallas_batched.1} parent=1 // pred_check_branch
      %13 = sbr.rel (0) target = $region9
    $region8: #{conv2d_pallas_batched.1} parent=1 // pred_region
      %s15 = ssub.s32 16, 16
      %16 = vsyncadd [#allocation4], %s15
      %s18 = sshll.u32 %s1, 4
      %s19 = int_to_ptr.vmem [resolvable:$true] %s18
      %21 = dma.vmem_to_smem %s19, 16, [#allocation3], [#allocation4]
    $region9: #{conv2d_pallas_batched.1} parent=1 // pred_fallthru
      _
    // Predicated region
    $region10: #{conv2d_pallas_batched.1} parent=1 // pred_check
      _
    $region11: #{conv2d_pallas_batched.1} parent=1 // pred_check_branch
      %23 = sbr.rel (0) target = $region13
    $region12: #{conv2d_pallas_batched.1} parent=1 // pred_region
      _
    $region13: #{conv2d_pallas_batched.1} parent=1 // pred_fallthru
      _
    // Predicated region
    $region14: #{conv2d_pallas_batched.1} parent=1 // pred_check
      _
    $region15: #{conv2d_pallas_batched.1} parent=1 // pred_check_branch
      %25 = sbr.rel (0) target = $region17
    $region16: #{conv2d_pallas_batched.1} parent=1 // pred_region
      %26 = dma.done [#allocation4], 16
    $region17: #{conv2d_pallas_batched.1} parent=1 // pred_fallthru
      _
    %27 = sfence
    %v28 = vld [vmem:[%s0] sm:$0xff]
    %v29 = vld [vmem:[%s0 + $0x8] sm:$0xff]
    %s30 = sld [smem:[#allocation2]]
    %31 = vrot.lane.b32.xlu0 %v28, 127
    %v32 = vpop.permute.xlu0 %31
    %33 = vrot.lane.b32.xlu0 %v29, 127
    %v34 = vpop.permute.xlu0 %33
    %35 = vrot.lane.b32.xlu0 %v28, 126
    %v36 = vpop.permute.xlu0 %35
    %37 = vrot.lane.b32.xlu0 %v29, 126
    %v38 = vpop.permute.xlu0 %37
    %s39 = sld [smem:[#allocation3]]
    %v40 = vstv %s39
    %v41 = vmul.f32 %v40, %v28
    %v42 = vmul.f32 %v40, %v29
    %v43 = vstv %s30
    %v44 = vadd.f32 %v41, %v43
    %v45 = vadd.f32 %v42, %v43
    %s46 = sld [smem:[#allocation3 + $0x1]]
    %v47 = vstv %s46
    %v48 = vmul.f32 %v47, %v32
    %v49 = vmul.f32 %v47, %v34
    %s50 = sld [smem:[#allocation3 + $0x2]]
    %v51 = vstv %s50
    %v52 = vmul.f32 %v51, %v36
    %v53 = vmul.f32 %v51, %v38
    %v54 = vadd.f32 %v44, %v52
    %v55 = vadd.f32 %v45, %v53
    %v56 = vrot.slane %v28, 1
    %v57 = vrot.slane %v29, 1
    %v58 = vlaneseq
    %v59 = vshrl.u32 %v58, 7
    %vm60 = vcmp.lt.s32.totalorder %v59, 7
    %v61 = vsel %vm60, %v56, %v57
    %v62 = vsel %vm60, %v57, %v56
    %s63 = sld [smem:[#allocation3 + $0x3]]
    %v64 = vstv %s63
    %v65 = vmul.f32 %v64, %v61
    %v66 = vmul.f32 %v64, %v62
    %v67 = vadd.f32 %v48, %v65
    %v68 = vadd.f32 %v49, %v66
    %v69 = vrot.slane %v32, 1
    %v70 = vrot.slane %v34, 1
    %v71 = vsel %vm60, %v69, %v70
    %v72 = vsel %vm60, %v70, %v69
    %s73 = sld [smem:[#allocation3 + $0x4]]
    %v74 = vstv %s73
    %v75 = vmul.f32 %v74, %v71
    %v76 = vmul.f32 %v74, %v72
    %v77 = vadd.f32 %v54, %v75
    %v78 = vadd.f32 %v55, %v76
    %v79 = vrot.slane %v36, 1
    %v80 = vrot.slane %v38, 1
    %v81 = vsel %vm60, %v79, %v80
    %v82 = vsel %vm60, %v80, %v79
    %s83 = sld [smem:[#allocation3 + $0x5]]
    %v84 = vstv %s83
    %v85 = vmul.f32 %v84, %v81
    %v86 = vmul.f32 %v84, %v82
    %v87 = vadd.f32 %v67, %v85
    %v88 = vadd.f32 %v68, %v86
    %v89 = vrot.slane %v28, 2
    %v90 = vrot.slane %v29, 2
    %vm91 = vcmp.lt.s32.totalorder %v59, 6
    %v92 = vsel %vm91, %v89, %v90
    %v93 = vsel %vm91, %v90, %v89
    %s94 = sld [smem:[#allocation3 + $0x6]]
    %v95 = vstv %s94
    %v96 = vmul.f32 %v95, %v92
    %v97 = vmul.f32 %v95, %v93
    %v98 = vadd.f32 %v77, %v96
    %v99 = vadd.f32 %v78, %v97
    %v100 = vrot.slane %v32, 2
    %v101 = vrot.slane %v34, 2
    %v102 = vsel %vm91, %v100, %v101
    %v103 = vsel %vm91, %v101, %v100
    %s104 = sld [smem:[#allocation3 + $0x7]]
    %v105 = vstv %s104
    %v106 = vmul.f32 %v105, %v102
    %v107 = vmul.f32 %v105, %v103
    %v108 = vadd.f32 %v87, %v106
    %v109 = vadd.f32 %v88, %v107
    %v110 = vrot.slane %v36, 2
    %v111 = vrot.slane %v38, 2
    %v112 = vsel %vm91, %v110, %v111
    %v113 = vsel %vm91, %v111, %v110
    %s114 = sld [smem:[#allocation3 + $0x8]]
    %v115 = vstv %s114
    %v116 = vmul.f32 %v115, %v112
    %v117 = vmul.f32 %v115, %v113
    %v118 = vadd.f32 %v98, %v116
    %v119 = vadd.f32 %v99, %v117
    %v120 = vadd.f32 %v118, %v108
    %v121 = vadd.f32 %v119, %v109
    %122 = vst [vmem:[%s3] sm:$0xff] %v120
    %123 = vst [vmem:[%s3 + $0x8] sm:$0xff] %v121
    // Predicated region
    $region18: #{conv2d_pallas_batched.1} parent=1 // pred_check
      _
    $region19: #{conv2d_pallas_batched.1} parent=1 // pred_check_branch
      %125 = sbr.rel (0) target = $region21
    $region20: #{conv2d_pallas_batched.1} parent=1 // pred_region
      _
    $region21: #{conv2d_pallas_batched.1} parent=1 // pred_fallthru
      _
    // Predicated region
    $region22: #{conv2d_pallas_batched.1} parent=1 // pred_check
      _
    $region23: #{conv2d_pallas_batched.1} parent=1 // pred_check_branch
      %127 = sbr.rel (0) target = $region25
    $region24: #{conv2d_pallas_batched.1} parent=1 // pred_region
      _
    $region25: #{conv2d_pallas_batched.1} parent=1 // pred_fallthru
      _
    %128 = vsyncpa [#allocation4], 1

</llo_original>
